<compile_context>
chip_gen: v6e
topology: v6e:2x2x1
jax: 0.10.0
libtpu: 0.0.40
codegen_flags: <defaults>
</compile_context>

<pallas_src>
import functools

import jax
import jax.numpy as jnp
from jax import lax
from jax.experimental import pallas as pl
from jax.experimental.pallas import tpu as pltpu


# ----------------------------------------------------------------------------
# Kernel: zero pad rows, copy image into bf16 VMEM scratch (lane-merged W*Cin),
# KH banded bf16 MXU matmuls with f32 accumulation (bias folded into the acc
# init), PReLU / LeakyReLU / identity, lane-dense (Ho, Wo*Cout) store.
# ----------------------------------------------------------------------------
def _conv_block_kernel(x_ref, w_ref, b_ref, a_ref, o_ref, xp_ref, *,
                       Nb, H, W, Ho, Wo, KH, Cin, Cout, pad, act):
    # x_ref : (Nb, H, W*Cin)        bf16  activations (lane-dense)
    # w_ref : (KH, W*Cin, Wo*Cout)  bf16  BN-folded banded weights
    # b_ref : (1, Wo*Cout)          f32   folded bias, tiled over Wo
    # a_ref : (1, Wo*Cout)          f32   PReLU slope, tiled over Wo
    # o_ref : (Nb, Ho, Wo*Cout)     f32   output (lane-dense)
    # xp_ref: (Nb, H+2*pad, W*Cin)  bf16  scratch with zeroed pad rows
    WC = W * Cin
    M = Wo * Cout

    # Bias folded into the accumulator init; broadcast hoisted out of the loops.
    bias_tile = jnp.broadcast_to(b_ref[...], (Ho, M))
    alpha_row = a_ref[...] if act == "prelu" else None
    if pad:
        zrows = jnp.zeros((pad, WC), xp_ref.dtype)

    for i in range(Nb):  # static unroll over images in this grid step
        # ---- in-kernel 'same' padding: zero only the 2*pad border rows -------
        if pad:
            xp_ref[i, pl.ds(0, pad), :] = zrows
            xp_ref[i, pl.ds(pad + H, pad), :] = zrows
        xp_ref[i, pl.ds(pad, H), :] = x_ref[i]          # full-lane aligned store

        # ---- conv: KH banded MXU matmuls (K = W*Cin, N = Wo*Cout) -------------
        acc = bias_tile
        for kh in range(KH):
            acc = acc + jnp.dot(xp_ref[i, pl.ds(kh, Ho), :], w_ref[kh],
                                preferred_element_type=jnp.float32)

        # ---- activation --------------------------------------------------------
        if act == "prelu":            # per-channel learnable slope (init 0.25)
            acc = jnp.where(acc >= 0.0, acc, alpha_row * acc)
        elif act == "leaky_relu":     # discriminator branch: LeakyReLU(0.2)
            acc = jnp.where(acc >= 0.0, acc, 0.2 * acc)
        o_ref[i] = acc.astype(o_ref.dtype)               # lane-dense (Ho, Wo*Cout)


def _banded_weight(w_hwio, W, Wo, pad):
    """(KH, KW, Cin, Cout) -> (KH, W*Cin, Wo*Cout) banded matrix.

    band[kh, w*Cin + c, wo*Cout + co] = w[kh, w - wo + pad, c, co]
    whenever 0 <= w - wo + pad < KW, else 0.  Multiplying the lane-merged image
    rows against this performs the whole kw & Cin contraction on the MXU, and
    the zero band outside the image reproduces 'same' zero padding in W.
    """
    KH, KW, Cin, Cout = w_hwio.shape
    kw = jnp.arange(W)[:, None] - jnp.arange(Wo)[None, :] + pad        # (W, Wo)
    valid = (kw >= 0) & (kw < KW)
    band = w_hwio[:, jnp.clip(kw, 0, KW - 1)]            # (KH, W, Wo, Cin, Cout)
    band = band * valid[None, :, :, None, None].astype(band.dtype)
    band = band.transpose(0, 1, 3, 2, 4).reshape(KH, W * Cin, Wo * Cout)
    return band.astype(jnp.bfloat16)


@functools.lru_cache(maxsize=None)
def _build_forward(N, H, W, KH, KW, Cin, Cout, pad, act, Nb=1):
    assert N % Nb == 0
    Ho, Wo = H + 2 * pad - KH + 1, W + 2 * pad - KW + 1
    WC, M, Hs = W * Cin, Wo * Cout, H + 2 * pad

    kernel = functools.partial(_conv_block_kernel, Nb=Nb, H=H, W=W, Ho=Ho, Wo=Wo,
                               KH=KH, Cin=Cin, Cout=Cout, pad=pad, act=act)

    in_specs = [
        pl.BlockSpec((Nb, H, WC), lambda n: (n, 0, 0)),     # bf16 activations
        pl.BlockSpec((KH, WC, M), lambda n: (0, 0, 0)),     # bf16 banded weights
        pl.BlockSpec((1, M), lambda n: (0, 0)),             # folded bias (tiled over Wo)
        pl.BlockSpec((1, M), lambda n: (0, 0)),             # PReLU alpha (tiled over Wo)
    ]
    out_spec = pl.BlockSpec((Nb, Ho, M), lambda n: (n, 0, 0))
    scratch = [pltpu.VMEM((Nb, Hs, WC), jnp.bfloat16)]      # bf16 padded image

    # VMEM budget from the actual (double-buffered) block sizes with 1.5x
    # headroom, capped well below a v7x TensorCore's 64 MiB physical VMEM.
    need = (2 * Nb * H * WC * 2            # input blocks (bf16)
            + 2 * KH * WC * M * 2          # banded-weight blocks (bf16)
            + 2 * 2 * M * 4                # bias + alpha blocks (f32)
            + 2 * Nb * Ho * M * 4          # output blocks (f32)
            + Nb * Hs * WC * 2)            # padded-image scratch (bf16)
    vmem_limit = int(min(max(int(1.5 * need), 8 << 20), 48 << 20))

    cost = pl.CostEstimate(
        flops=2 * N * Ho * Wo * KH * KW * Cin * Cout,
        transcendentals=0,
        bytes_accessed=(N * H * WC * 2 + KH * WC * M * 2 + 2 * M * 4
                        + N * Ho * M * 4))

    call = pl.pallas_call(
        kernel,
        out_shape=jax.ShapeDtypeStruct((N, Ho, M), jnp.float32),
        grid=(N // Nb,),
        in_specs=in_specs,
        out_specs=out_spec,
        scratch_shapes=scratch,
        compiler_params=pltpu.CompilerParams(
            dimension_semantics=("parallel",),   # batch axis -> both v7x TCs
            vmem_limit_bytes=vmem_limit),
        cost_estimate=cost)

    def forward(x_nchw, w_hwio, bias, alpha):
        # NCHW -> lane-dense (N, H, W*Cin) bf16 HBM input (halves input DMA).
        x = jnp.transpose(x_nchw, (0, 2, 3, 1)).reshape(N, H, WC).astype(jnp.bfloat16)
        wb = _banded_weight(w_hwio, W, Wo, pad)
        b_flat = jnp.tile(bias.astype(jnp.float32), Wo).reshape(1, M)
        a_flat = jnp.tile(alpha.astype(jnp.float32), Wo).reshape(1, M)
        y = call(x, wb, b_flat, a_flat)                      # (N, Ho, Wo*Cout)
        y = y.reshape(N, Ho, Wo, Cout)
        return jnp.transpose(y, (0, 3, 1, 2))                # NHWC -> NCHW

    return jax.jit(forward), Ho, Wo


# ----------------------------------------------------------------------------
# Parameter construction (PyTorch-default init, BN folded into weights/bias)
# ----------------------------------------------------------------------------
def init_conv_block(key, in_channels, out_channels, *, kernel_size=3, stride=1,
                    padding=1, discriminator=False, use_act=True, use_bn=True,
                    bn_eps=1e-5):
    if stride != 1:
        raise NotImplementedError("stride > 1 not implemented")  # TODO(synk)
    KH = KW = int(kernel_size)
    k_w, k_b = jax.random.split(key)
    bound = float((in_channels * KH * KW) ** -0.5)
    w = jax.random.uniform(k_w, (KH, KW, in_channels, out_channels),
                           jnp.float32, -bound, bound)               # HWIO
    conv_b = (jnp.zeros((out_channels,), jnp.float32) if use_bn      # bias=not use_bn
              else jax.random.uniform(k_b, (out_channels,), jnp.float32, -bound, bound))

    if use_bn:  # eval-mode running stats of a fresh BatchNorm2d (see TODO above)
        gamma = jnp.ones((out_channels,), jnp.float32)
        beta = jnp.zeros((out_channels,), jnp.float32)
        mean = jnp.zeros((out_channels,), jnp.float32)
        var = jnp.ones((out_channels,), jnp.float32)
        scale = gamma * lax.rsqrt(var + bn_eps)
        bias = beta + (conv_b - mean) * scale
    else:
        scale = jnp.ones((out_channels,), jnp.float32)
        bias = conv_b

    act = ("leaky_relu" if discriminator else "prelu") if use_act else "none"
    return {
        "w": w * scale[None, None, None, :],      # BN scale folded, (KH,KW,Cin,Cout) f32
        "b": bias,                                # folded bias (Cout,)
        "alpha": jnp.full((out_channels,), 0.25, jnp.float32),  # nn.PReLU per-channel
        "w_raw": w, "scale": scale, "bias_vec": bias,           # pure-JAX reference
        "config": {"kh": KH, "kw": KW, "cout": out_channels, "pad": int(padding),
                   "act": act},
    }


# ----------------------------------------------------------------------------
# ConvBlock.forward:  act(bn(conv(x)))  (or bn(conv(x)) if use_act=False)
# ----------------------------------------------------------------------------
def conv_block_forward(x_nchw, params):
    cfg = params["config"]
    N, Cin, H, W = x_nchw.shape
    fwd, _, _ = _build_forward(N, H, W, cfg["kh"], cfg["kw"], Cin, cfg["cout"],
                               cfg["pad"], cfg["act"])
    return fwd(x_nchw, params["w"], params["b"], params["alpha"])


def conv_block_reference(x_nchw, params):
    """Pure-JAX (XLA) reference of the same forward, f32 end-to-end."""
    cfg = params["config"]
    x = jnp.transpose(x_nchw, (0, 2, 3, 1)).astype(jnp.float32)
    y = lax.conv_general_dilated(
        x, params["w_raw"], window_strides=(1, 1),
        padding=[(cfg["pad"], cfg["pad"]), (cfg["pad"], cfg["pad"])],
        dimension_numbers=("NHWC", "HWIO", "NHWC"))
    y = y * params["scale"] + params["bias_vec"]
    if cfg["act"] == "prelu":
        y = jnp.where(y >= 0.0, y, params["alpha"] * y)
    elif cfg["act"] == "leaky_relu":
        y = jnp.where(y >= 0.0, y, 0.2 * y)
    return jnp.transpose(y, (0, 3, 1, 2))


if __name__ == "__main__":
    key = jax.random.PRNGKey(0)
    k_p1, k_p2, k_x = jax.random.split(key, 3)

    N, Cin, H, W, Cout = 2, 4, 16, 16, 32
    x = jax.random.normal(k_x, (N, Cin, H, W), jnp.float32)          # NCHW like PyTorch

    # Generator-style block: Conv2d(4, 32, 3, 1, 1, bias=False) + BN + PReLU(32)
    params_g = init_conv_block(k_p1, Cin, Cout, kernel_size=3, padding=1,
                               discriminator=False, use_act=True, use_bn=True)
    y_g = jax.block_until_ready(conv_block_forward(x, params_g))
    assert y_g.shape == (N, Cout, H, W), y_g.shape
    assert bool(jnp.all(jnp.isfinite(y_g)))
    # NOTE: kernel computes in bf16 x bf16 -> f32 on the MXU; reference is f32.
    err_g = float(jnp.max(jnp.abs(y_g - conv_block_reference(x, params_g))))
    assert err_g < 5e-2, f"generator-block max abs err vs reference: {err_g}"

    # Discriminator-style block (stride 1): Conv2d + BN + LeakyReLU(0.2)
    params_d = init_conv_block(k_p2, Cin, Cout, kernel_size=3, padding=1,
                               discriminator=True, use_act=True, use_bn=True)
    y_d = jax.block_until_ready(conv_block_forward(x, params_d))
    assert y_d.shape == (N, Cout, H, W), y_d.shape
    err_d = float(jnp.max(jnp.abs(y_d - conv_block_reference(x, params_d))))
    assert err_d < 5e-2, f"discriminator-block max abs err vs reference: {err_d}"

    print("KERNEL_OK")
</pallas_src>

<mosaic_0001>
module attributes {stable_mosaic.version = 11 : i64} {
  func.func @_conv_block_kernel(%arg0: i32, %arg1: memref<1x16x64xbf16, #tpu.memory_space<vmem>>, %arg2: memref<3x64x512xbf16, #tpu.memory_space<vmem>>, %arg3: memref<1x512xf32, #tpu.memory_space<vmem>>, %arg4: memref<1x512xf32, #tpu.memory_space<vmem>>, %arg5: memref<1x16x512xf32, #tpu.memory_space<vmem>>, %arg6: memref<1x18x64xbf16, #tpu.memory_space<vmem>>) attributes {dimension_semantics = [#tpu.dimension_semantics<parallel>], iteration_bounds = array<i64: 2>, scalar_prefetch = 0 : i64, scratch_operands = 1 : i64, tpu.core_type = #tpu.core_type<tc>, window_params = [{transform_indices = @transform_0, window_bounds = array<i64: 1, 16, 64>}, {pipeline_mode = #tpu.pipeline_mode<synchronous>, transform_indices = @transform_1, window_bounds = array<i64: 3, 64, 512>}, {pipeline_mode = #tpu.pipeline_mode<synchronous>, transform_indices = @transform_2, window_bounds = array<i64: 1, 512>}, {pipeline_mode = #tpu.pipeline_mode<synchronous>, transform_indices = @transform_3, window_bounds = array<i64: 1, 512>}, {transform_indices = @transform_4, window_bounds = array<i64: 1, 16, 512>}]} {
    %c0 = arith.constant 0 : index
    %c0_0 = arith.constant 0 : index
    %0 = vector.load %arg3[%c0, %c0_0] : memref<1x512xf32, #tpu.memory_space<vmem>>, vector<1x512xf32>
    %1 = vector.shape_cast %0 : vector<1x512xf32> to vector<1x512xf32>
    %2 = vector.broadcast %1 : vector<1x512xf32> to vector<16x512xf32>
    %c0_1 = arith.constant 0 : index
    %c0_2 = arith.constant 0 : index
    %3 = vector.load %arg4[%c0_1, %c0_2] : memref<1x512xf32, #tpu.memory_space<vmem>>, vector<1x512xf32>
    %cst = arith.constant 0.000000e+00 : bf16
    %4 = vector.broadcast %cst : bf16 to vector<1x64xbf16>
    %c0_3 = arith.constant 0 : index
    %c0_4 = arith.constant 0 : index
    %c0_5 = arith.constant 0 : index
    %5 = vector.load %arg6[%c0_3, %c0_4, %c0_5] : memref<1x18x64xbf16, #tpu.memory_space<vmem>>, vector<1x1x64xbf16>
    %6 = vector.shape_cast %5 : vector<1x1x64xbf16> to vector<1x64xbf16>
    %7 = vector.shape_cast %4 : vector<1x64xbf16> to vector<1x1x64xbf16>
    tpu.vector_store %arg6[%c0_3, %c0_4, %c0_5], %7 {strides = array<i32>} : memref<1x18x64xbf16, #tpu.memory_space<vmem>>, vector<1x1x64xbf16>,
    %c0_6 = arith.constant 0 : index
    %c17 = arith.constant 17 : index
    %c0_7 = arith.constant 0 : index
    %8 = vector.load %arg6[%c0_6, %c17, %c0_7] : memref<1x18x64xbf16, #tpu.memory_space<vmem>>, vector<1x1x64xbf16>
    %9 = vector.shape_cast %8 : vector<1x1x64xbf16> to vector<1x64xbf16>
    %10 = vector.shape_cast %4 : vector<1x64xbf16> to vector<1x1x64xbf16>
    tpu.vector_store %arg6[%c0_6, %c17, %c0_7], %10 {strides = array<i32>} : memref<1x18x64xbf16, #tpu.memory_space<vmem>>, vector<1x1x64xbf16>,
    %c0_8 = arith.constant 0 : index
    %c0_9 = arith.constant 0 : index
    %c0_10 = arith.constant 0 : index
    %11 = vector.load %arg1[%c0_8, %c0_9, %c0_10] : memref<1x16x64xbf16, #tpu.memory_space<vmem>>, vector<1x16x64xbf16>
    %12 = vector.shape_cast %11 : vector<1x16x64xbf16> to vector<16x64xbf16>
    %c0_11 = arith.constant 0 : index
    %c1 = arith.constant 1 : index
    %c0_12 = arith.constant 0 : index
    %13 = vector.load %arg6[%c0_11, %c1, %c0_12] : memref<1x18x64xbf16, #tpu.memory_space<vmem>>, vector<1x16x64xbf16>
    %14 = vector.shape_cast %13 : vector<1x16x64xbf16> to vector<16x64xbf16>
    %15 = vector.shape_cast %12 : vector<16x64xbf16> to vector<1x16x64xbf16>
    tpu.vector_store %arg6[%c0_11, %c1, %c0_12], %15 {strides = array<i32>} : memref<1x18x64xbf16, #tpu.memory_space<vmem>>, vector<1x16x64xbf16>,
    %c0_13 = arith.constant 0 : index
    %c0_14 = arith.constant 0 : index
    %c0_15 = arith.constant 0 : index
    %16 = vector.load %arg6[%c0_13, %c0_14, %c0_15] : memref<1x18x64xbf16, #tpu.memory_space<vmem>>, vector<1x16x64xbf16>
    %17 = vector.shape_cast %16 : vector<1x16x64xbf16> to vector<16x64xbf16>
    %c0_16 = arith.constant 0 : index
    %c0_17 = arith.constant 0 : index
    %c0_18 = arith.constant 0 : index
    %18 = vector.load %arg2[%c0_16, %c0_17, %c0_18] : memref<3x64x512xbf16, #tpu.memory_space<vmem>>, vector<1x64x512xbf16>
    %19 = vector.shape_cast %18 : vector<1x64x512xbf16> to vector<64x512xbf16>
    %cst_19 = arith.constant dense<0.000000e+00> : vector<16x512xf32>
    %20 = tpu.matmul %17, %19, %cst_19 {dimension_numbers = #tpu.dot_dimension_numbers<[1], [0], [0], [1], [0, 0, 1, 1], [], []>} : vector<16x64xbf16>, vector<64x512xbf16>, vector<16x512xf32> -> vector<16x512xf32>
    %21 = arith.addf %2, %20 : vector<16x512xf32>
    %c0_20 = arith.constant 0 : index
    %c1_21 = arith.constant 1 : index
    %c0_22 = arith.constant 0 : index
    %22 = vector.load %arg6[%c0_20, %c1_21, %c0_22] : memref<1x18x64xbf16, #tpu.memory_space<vmem>>, vector<1x16x64xbf16>
    %23 = vector.shape_cast %22 : vector<1x16x64xbf16> to vector<16x64xbf16>
    %c1_23 = arith.constant 1 : index
    %c0_24 = arith.constant 0 : index
    %c0_25 = arith.constant 0 : index
    %24 = vector.load %arg2[%c1_23, %c0_24, %c0_25] : memref<3x64x512xbf16, #tpu.memory_space<vmem>>, vector<1x64x512xbf16>
    %25 = vector.shape_cast %24 : vector<1x64x512xbf16> to vector<64x512xbf16>
    %cst_26 = arith.constant dense<0.000000e+00> : vector<16x512xf32>
    %26 = tpu.matmul %23, %25, %cst_26 {dimension_numbers = #tpu.dot_dimension_numbers<[1], [0], [0], [1], [0, 0, 1, 1], [], []>} : vector<16x64xbf16>, vector<64x512xbf16>, vector<16x512xf32> -> vector<16x512xf32>
    %27 = arith.addf %21, %26 : vector<16x512xf32>
    %c0_27 = arith.constant 0 : index
    %c2 = arith.constant 2 : index
    %c0_28 = arith.constant 0 : index
    %28 = vector.load %arg6[%c0_27, %c2, %c0_28] : memref<1x18x64xbf16, #tpu.memory_space<vmem>>, vector<1x16x64xbf16>
    %29 = vector.shape_cast %28 : vector<1x16x64xbf16> to vector<16x64xbf16>
    %c2_29 = arith.constant 2 : index
    %c0_30 = arith.constant 0 : index
    %c0_31 = arith.constant 0 : index
    %30 = vector.load %arg2[%c2_29, %c0_30, %c0_31] : memref<3x64x512xbf16, #tpu.memory_space<vmem>>, vector<1x64x512xbf16>
    %31 = vector.shape_cast %30 : vector<1x64x512xbf16> to vector<64x512xbf16>
    %cst_32 = arith.constant dense<0.000000e+00> : vector<16x512xf32>
    %32 = tpu.matmul %29, %31, %cst_32 {dimension_numbers = #tpu.dot_dimension_numbers<[1], [0], [0], [1], [0, 0, 1, 1], [], []>} : vector<16x64xbf16>, vector<64x512xbf16>, vector<16x512xf32> -> vector<16x512xf32>
    %33 = arith.addf %27, %32 : vector<16x512xf32>
    %cst_33 = arith.constant 0.000000e+00 : f32
    %34 = vector.broadcast %cst_33 : f32 to vector<16x512xf32>
    %35 = arith.cmpf oge, %33, %34 : vector<16x512xf32>
    %36 = vector.broadcast %3 : vector<1x512xf32> to vector<16x512xf32>
    %37 = arith.mulf %36, %33 : vector<16x512xf32>
    %38 = arith.select %35, %33, %37 : vector<16x512xi1>, vector<16x512xf32>
    %c0_34 = arith.constant 0 : index
    %c0_35 = arith.constant 0 : index
    %c0_36 = arith.constant 0 : index
    %39 = vector.load %arg5[%c0_34, %c0_35, %c0_36] : memref<1x16x512xf32, #tpu.memory_space<vmem>>, vector<1x16x512xf32>
    %40 = vector.shape_cast %39 : vector<1x16x512xf32> to vector<16x512xf32>
    %41 = vector.shape_cast %38 : vector<16x512xf32> to vector<1x16x512xf32>
    tpu.vector_store %arg5[%c0_34, %c0_35, %c0_36], %41 {strides = array<i32>} : memref<1x16x512xf32, #tpu.memory_space<vmem>>, vector<1x16x512xf32>,
    return
  }
  func.func @transform_0(%arg0: i32) -> (i32, i32, i32) {
    %c0_i32 = arith.constant 0 : i32
    %c0_i32_0 = arith.constant 0 : i32
    %c0_i32_1 = arith.constant 0 : i32
    return %arg0, %c0_i32, %c0_i32_0 : i32, i32, i32
  }
  func.func @transform_1(%arg0: i32) -> (i32, i32, i32) {
    %c0_i32 = arith.constant 0 : i32
    %c0_i32_0 = arith.constant 0 : i32
    %c0_i32_1 = arith.constant 0 : i32
    %c0_i32_2 = arith.constant 0 : i32
    return %c0_i32, %c0_i32_0, %c0_i32_1 : i32, i32, i32
  }
  func.func @transform_2(%arg0: i32) -> (i32, i32) {
    %c0_i32 = arith.constant 0 : i32
    %c0_i32_0 = arith.constant 0 : i32
    %c0_i32_1 = arith.constant 0 : i32
    return %c0_i32, %c0_i32_0 : i32, i32
  }
  func.func @transform_3(%arg0: i32) -> (i32, i32) {
    %c0_i32 = arith.constant 0 : i32
    %c0_i32_0 = arith.constant 0 : i32
    %c0_i32_1 = arith.constant 0 : i32
    return %c0_i32, %c0_i32_0 : i32, i32
  }
  func.func @transform_4(%arg0: i32) -> (i32, i32, i32) {
    %c0_i32 = arith.constant 0 : i32
    %c0_i32_0 = arith.constant 0 : i32
    %c0_i32_1 = arith.constant 0 : i32
    return %arg0, %c0_i32, %c0_i32_0 : i32, i32, i32
  }
}

</mosaic_0001>

<llo_original>
// kernel: tile.13
$region0: #{tile.13}
  #allocation0 [shape = 's32[1]{0}', space=sflag, size = 0x4, scoped, tag = 'scoped memory for tile.13']
  %s0 = inlined_call_operand.vmem [shape: f32[32], index: 0, kind: input, shape index: {}]
  %s1 = inlined_call_operand.vmem [shape: f32[16,32], index: 1, kind: output, shape index: {}]
  // Predicated region
  $region2: #{tile.13} parent=0 // pred_check
    _
  $region3: #{tile.13} parent=0 // pred_check_branch
    %3 = sbr.rel (0) target = $region5
  $region4: #{tile.13} parent=0 // pred_region
    _
  $region5: #{tile.13} parent=0 // pred_fallthru
    _
  %v4 = vld [vmem:[%s0] ss:$0 sm:$0xff]
  %5 = vst [vmem:[%s1] sm:$0xff] %v4
  %s6 = scalar_lea.vmem %s1, 8
  %7 = vst [vmem:[%s6] sm:$0xff] %v4

// kernel: tile.14
$region0: #{tile.14}
  %s0 = inlined_call_operand.vmem [shape: f32[16,32], index: 0, kind: input, shape index: {}]
  %s1 = inlined_call_operand.vmem [shape: f32[1,512], index: 1, kind: output, shape index: {}]
  $region1: #{tile.14} parent=0
    #allocation0 [shape = 'u8[16384]{0}', space=vmem, size = 0x4000, scoped, tag = 'scoped mem for output reshape']
    %v2 = vld [vmem:[%s0] ss:$4 sm:$0xf]
    %vm3 = vcmask 261120
    %4 = vst.msk [vmem:[#allocation0] ss:$8 sm:$0xf] %vm3, %v2
    %s5 = scalar_lea.vmem %s0, 3
    %v6 = vld [vmem:[%s5] ss:$4 sm:$0xf]
    %7 = vrot.lane.b32.xlu0 %v6, 96
    %v8 = vpop.permute.xlu0 %7
    %vm9 = vcmask 1048320
    %10 = vst.msk [vmem:[#allocation0] ss:$8 sm:$0xf] %vm9, %v8
    %s11 = scalar_lea.vmem %s0, 2
    %v12 = vld [vmem:[%s11] ss:$4 sm:$0xf]
    %13 = vrot.lane.b32.xlu0 %v12, 64
    %v14 = vpop.permute.xlu0 %13
    %vm15 = vcmask 785920
    %16 = vst.msk [vmem:[#allocation0] ss:$8 sm:$0xf] %vm15, %v14
    %s17 = scalar_lea.vmem %s0, 1
    %v18 = vld [vmem:[%s17] ss:$4 sm:$0xf]
    %19 = vrot.lane.b32.xlu0 %v18, 32
    %v20 = vpop.permute.xlu0 %19
    %vm21 = vcmask 523520
    %22 = vst.msk [vmem:[#allocation0] ss:$8 sm:$0xf] %vm21, %v20
    %s24 = sshll.u32 1, 1
    %s25 = ssub.s32 %s24, 1
    %v27 = vld [vmem:[#allocation0] sm:%s25]
    %s28 = sshll.u32 1, 1
    %s29 = ssub.s32 %s28, 1
    %30 = vst [vmem:[%s1] sm:%s29] %v27
    %s31 = scalar_lea.vmem [#allocation0], 8
    %v32 = vld [vmem:[%s31] sm:%s25]
    %s33 = sshll.u32 1, 1
    %s34 = ssub.s32 %s33, 1
    %s35 = scalar_lea.vmem %s1, 1
    %36 = vst [vmem:[%s35] sm:%s34] %v32
    %s37 = scalar_lea.vmem [#allocation0], 16
    %v38 = vld [vmem:[%s37] sm:%s25]
    %s39 = sshll.u32 1, 1
    %s40 = ssub.s32 %s39, 1
    %s41 = smul.addr 1, 2
    %s42 = scalar_lea.vmem %s1, %s41
    %43 = vst [vmem:[%s42] sm:%s40] %v38
    %s44 = scalar_lea.vmem [#allocation0], 24
    %v45 = vld [vmem:[%s44] sm:%s25]
    %s46 = sshll.u32 1, 1
    %s47 = ssub.s32 %s46, 1
    %s48 = smul.addr 1, 3
    %s49 = scalar_lea.vmem %s1, %s48
    %50 = vst [vmem:[%s49] sm:%s47] %v45

// kernel: forward.1
$region0: #{forward.1}
  #allocation0 [shape = 'u32[]', space=smem, size = 0x4, offset = 0x4, fixed_abs, tag = 'smem constant byte address 0x4 - core index']
  #allocation1 [shape = 'u32[144,128]{1,0:T(1,128)}', space=vmem, size = 0x12000, scoped, tag = 'internal scratch']
  #allocation2 [shape = 'bf16[1,18,64]{2,1,0:T(8,128)(2,1)}', space=vmem, size = 0x1800, scoped, tag = 'scratch operand']
  %s0 = inlined_call_operand.vmem [shape: bf16[2,16,64], index: 0, kind: input, shape index: {}]
  %s1 = inlined_call_operand.vmem [shape: bf16[3,64,512], index: 1, kind: input, shape index: {}]
  %s2 = inlined_call_operand.vmem [shape: f32[1,512], index: 2, kind: input, shape index: {}]
  %s3 = inlined_call_operand.vmem [shape: f32[1,512], index: 3, kind: input, shape index: {}]
  %s4 = inlined_call_operand.vmem [shape: f32[2,16,512], index: 4, kind: output, shape index: {}]
  %s5 = sld [smem:[#allocation0]]
  $region49: #{forward.1} parent=0
    _
  %s7 = ssub.s32 1, %s5
  %s8 = scalar_select 0, %s7, %s5
  loop: start=0, step=1, limit=4
  $region2: #{forward.1} parent=0 // loop_pre_header
    _
  $region3: #{forward.1} parent=0 // loop_header
    %s10 = sphi 0, %s14
    %p11 = scmp.ge.s32.totalorder %s10, 4
    %s20 = sphi 0, %s22
    %s23 = sphi 0, %s20
    %s24 = sphi 0, %s23
    %s40 = sphi 0, %s24
    %s44 = sphi 0, %s44
    %s46 = sphi 0, %s44
    %s47 = sphi 0, %s46
    %s61 = sphi 0, %s47
    %s65 = sphi 0, %s65
    %s67 = sphi 0, %s65
    %s68 = sphi 0, %s67
    %s82 = sphi 0, %s68
    %s86 = sphi 0, %s86
    %s88 = sphi 0, %s86
    %s89 = sphi 0, %s88
    %s103 = sphi 0, %s89
    %s109 = sphi 0, %s111
    %s112 = sphi 0, %s109
    %s113 = sphi 0, %s112
    %s129 = sphi 0, %s113
  $region4: #{forward.1} parent=0 // loop_header_branch
    %13 = sbr.rel (%p11) target = $region8
  $region5: #{forward.1} parent=0 // loop_body
    %s15 = ssub.s32 %s10, 1
    %s16 = ssub.s32 %s10, 2
    %s17 = sadd.s32 %s10, 1
    %s18 = ssub.s32 %s10, %s17
    %p19 = scmp.eq.s32.totalorder %s18, 0
    %s21 = sadd.s32 %s20, 1
    %s22 = scalar_select %p19, %s20, %s21
    %p25 = pneg %p19
    %p26 = scmp.eq.s32.totalorder %s10, 1
    %p27 = por %p25, %p26
    %p28 = scmp.ne.s32.totalorder %s20, %s23
    %p29 = scmp.eq.s32.totalorder %s10, 0
    %p30 = por %p28, %p29
    %p31 = scmp.ne.s32.totalorder %s20, %s23
    %p32 = scmp.eq.s32.totalorder %s15, 1
    %p33 = por %p31, %p32
    %p34 = scmp.ne.s32.totalorder %s23, %s24
    %p35 = scmp.eq.s32.totalorder %s15, 0
    %p36 = por %p34, %p35
    %p37 = scmp.ne.s32.totalorder %s23, %s24
    %p38 = scmp.eq.s32.totalorder %s16, 1
    %p39 = por %p37, %p38
    %p41 = scmp.ne.s32.totalorder %s24, %s40
    %p42 = scmp.eq.s32.totalorder %s16, 0
    %p43 = por %p41, %p42
    %s45 = sadd.s32 %s44, 1
    %p48 = scmp.eq.s32.totalorder %s10, 1
    %p49 = scmp.ne.s32.totalorder %s44, %s46
    %p50 = scmp.eq.s32.totalorder %s10, 0
    %p51 = por %p49, %p50
    %p52 = scmp.ne.s32.totalorder %s44, %s46
    %p53 = scmp.eq.s32.totalorder %s15, 1
    %p54 = por %p52, %p53
    %p55 = scmp.ne.s32.totalorder %s46, %s47
    %p56 = scmp.eq.s32.totalorder %s15, 0
    %p57 = por %p55, %p56
    %p58 = scmp.ne.s32.totalorder %s46, %s47
    %p59 = scmp.eq.s32.totalorder %s16, 1
    %p60 = por %p58, %p59
    %p62 = scmp.ne.s32.totalorder %s47, %s61
    %p63 = scmp.eq.s32.totalorder %s16, 0
    %p64 = por %p62, %p63
    %s66 = sadd.s32 %s65, 1
    %p69 = scmp.eq.s32.totalorder %s10, 1
    %p70 = scmp.ne.s32.totalorder %s65, %s67
    %p71 = scmp.eq.s32.totalorder %s10, 0
    %p72 = por %p70, %p71
    %p73 = scmp.ne.s32.totalorder %s65, %s67
    %p74 = scmp.eq.s32.totalorder %s15, 1
    %p75 = por %p73, %p74
    %p76 = scmp.ne.s32.totalorder %s67, %s68
    %p77 = scmp.eq.s32.totalorder %s15, 0
    %p78 = por %p76, %p77
    %p79 = scmp.ne.s32.totalorder %s67, %s68
    %p80 = scmp.eq.s32.totalorder %s16, 1
    %p81 = por %p79, %p80
    %p83 = scmp.ne.s32.totalorder %s68, %s82
    %p84 = scmp.eq.s32.totalorder %s16, 0
    %p85 = por %p83, %p84
    %s87 = sadd.s32 %s86, 1
    %p90 = scmp.eq.s32.totalorder %s10, 1
    %p91 = scmp.ne.s32.totalorder %s86, %s88
    %p92 = scmp.eq.s32.totalorder %s10, 0
    %p93 = por %p91, %p92
    %p94 = scmp.ne.s32.totalorder %s86, %s88
    %p95 = scmp.eq.s32.totalorder %s15, 1
    %p96 = por %p94, %p95
    %p97 = scmp.ne.s32.totalorder %s88, %s89
    %p98 = scmp.eq.s32.totalorder %s15, 0
    %p99 = por %p97, %p98
    %p100 = scmp.ne.s32.totalorder %s88, %s89
    %p101 = scmp.eq.s32.totalorder %s16, 1
    %p102 = por %p100, %p101
    %p104 = scmp.ne.s32.totalorder %s89, %s103
    %p105 = scmp.eq.s32.totalorder %s16, 0
    %p106 = por %p104, %p105
    %s107 = ssub.s32 %s10, %s17
    %p108 = scmp.eq.s32.totalorder %s107, 0
    %s110 = sadd.s32 %s109, 1
    %s111 = scalar_select %p108, %s109, %s110
    %p114 = pneg %p108
    %p115 = scmp.eq.s32.totalorder %s10, 1
    %p116 = por %p114, %p115
    %p117 = scmp.ne.s32.totalorder %s109, %s112
    %p118 = scmp.eq.s32.totalorder %s10, 0
    %p119 = por %p117, %p118
    %p120 = scmp.ne.s32.totalorder %s109, %s112
    %p121 = scmp.eq.s32.totalorder %s15, 1
    %p122 = por %p120, %p121
    %p123 = scmp.ne.s32.totalorder %s112, %s113
    %p124 = scmp.eq.s32.totalorder %s15, 0
    %p125 = por %p123, %p124
    %p126 = scmp.ne.s32.totalorder %s112, %s113
    %p127 = scmp.eq.s32.totalorder %s16, 1
    %p128 = por %p126, %p127
    %p130 = scmp.ne.s32.totalorder %s113, %s129
    %p131 = scmp.eq.s32.totalorder %s16, 0
    %p132 = por %p130, %p131
    %p133 = scmp.le.s32.totalorder 1, %s10
    %p134 = scmp.lt.s32.totalorder %s10, 3
    %p135 = pnand %p133, %p134
    %p136 = pneg %p135
    // Predicated region
    $region9: #{forward.1} parent=5 // pred_check
      _
    $region10: #{forward.1} parent=5 // pred_check_branch
      %138 = sbr.rel (%p135) target = $region12
    $region11: #{forward.1} parent=5 // pred_region
      %s139 = ssub.s32 %s10, 1
      // Predicated region
      $region13: #{forward.1} parent=11 // pred_check
        %p140 = pneg %p57
      $region14: #{forward.1} parent=11 // pred_check_branch
        %142 = sbr.rel (%p140) target = $region16
      $region15: #{forward.1} parent=11 // pred_region
        _
      $region16: #{forward.1} parent=11 // pred_fallthru
        _
      // Predicated region
      $region17: #{forward.1} parent=11 // pred_check
        %p143 = pneg %p78
      $region18: #{forward.1} parent=11 // pred_check_branch
        %145 = sbr.rel (%p143) target = $region20
      $region19: #{forward.1} parent=11 // pred_region
        _
      $region20: #{forward.1} parent=11 // pred_fallthru
        _
      // Predicated region
      $region21: #{forward.1} parent=11 // pred_check
        %p146 = pneg %p99
      $region22: #{forward.1} parent=11 // pred_check_branch
        %148 = sbr.rel (%p146) target = $region24
      $region23: #{forward.1} parent=11 // pred_region
        _
      $region24: #{forward.1} parent=11 // pred_fallthru
        _
    $region12: #{forward.1} parent=5 // pred_fallthru
      _
    %p149 = scmp.lt.s32.totalorder %s10, 2
    // Predicated region
    $region25: #{forward.1} parent=5 // pred_check
      %p150 = pneg %p149
    $region26: #{forward.1} parent=5 // pred_check_branch
      %152 = sbr.rel (%p150) target = $region28
    $region27: #{forward.1} parent=5 // pred_region
      // Predicated region
      $region29: #{forward.1} parent=27 // pred_check
        %p153 = pneg %p30
      $region30: #{forward.1} parent=27 // pred_check_branch
        %155 = sbr.rel (%p153) target = $region32
      $region31: #{forward.1} parent=27 // pred_region
        %p156 = scmp.lt.s32.totalorder %s10, 1
        %s157 = scalar_select %p156, %s10, 1
        %s158 = smul.addr %s157, 2
        %s159 = smul.addr %s158, 4
        %s160 = scalar_lea.vmem %s0, %s159
      $region32: #{forward.1} parent=27 // pred_fallthru
        _
    $region28: #{forward.1} parent=5 // pred_fallthru
      _
    %p161 = scmp.le.s32.totalorder 1, %s10
    %p162 = scmp.lt.s32.totalorder %s10, 3
    %p163 = pnand %p161, %p162
    %p164 = pneg %p163
    // Predicated region
    $region33: #{forward.1} parent=5 // pred_check
      _
    $region34: #{forward.1} parent=5 // pred_check_branch
      %166 = sbr.rel (%p163) target = $region36
    $region35: #{forward.1} parent=5 // pred_region
      %s167 = ssub.s32 %s10, 1
      %p168 = scmp.lt.s32.totalorder %s15, 1
      %s169 = scalar_select %p168, %s15, 1
      %s170 = smul.addr %s169, 2
      %s171 = smul.addr %s170, 4
      %s172 = scalar_lea.vmem %s0, %s171
      %p173 = pneg %p36
      %p174 = pneg %p33
      %p175 = pneg %p57
      %p176 = pneg %p54
      %p177 = pneg %p78
      %p178 = pneg %p75
      %p179 = pneg %p99
      %p180 = pneg %p96
      %p181 = pneg %p125
      %p182 = pneg %p122
      %p183 = scmp.lt.s32.totalorder %s15, 1
      %s184 = scalar_select %p183, %s15, 1
      %s185 = smul.addr %s184, 8
      %s186 = smul.addr %s185, 8
      %s187 = scalar_lea.vmem %s4, %s186
      %p188 = scmp.lt.s32.totalorder %s15, 1
      %s189 = scalar_select %p188, %s15, 1
      %s190 = smul.addr %s189, 2
      %s191 = smul.addr %s190, 4
      %s192 = scalar_lea.vmem %s0, %s191
      %p193 = scmp.lt.s32.totalorder %s15, 1
      %s194 = scalar_select %p193, %s15, 1
      %s195 = smul.addr %s194, 8
      %s196 = smul.addr %s195, 8
      %s197 = scalar_lea.vmem %s4, %s196
      %v199 = vld [vmem:[%s2] sm:$0xf]
      %v201 = vlaneseq
      %v202 = vshrl.u32 %v201, 7
      %v203 = vsub.s32 0, %v202
      %v204 = vrot.slane %v199, %v203
      %v205 = vlaneseq
      %v206 = vshrl.u32 %v205, 7
      %v207 = vsub.s32 1, %v206
      %v208 = vrot.slane %v199, %v207
      %v209 = vlaneseq
      %v210 = vshrl.u32 %v209, 7
      %v211 = vsub.s32 2, %v210
      %v212 = vrot.slane %v199, %v211
      %v213 = vlaneseq
      %v214 = vshrl.u32 %v213, 7
      %v215 = vsub.s32 3, %v214
      %v216 = vrot.slane %v199, %v215
      %v221 = vld [vmem:[%s3] sm:$0xf]
      %vm222 = vcmask 516096
      %vm223 = vsmask.f32 256
      %vm224 = vmand %vm222, %vm223
      %v225 = vld [vmem:[#allocation2] sm:$0x1]
      %v226 = vsel %vm224, 0, %v225
      %227 = vst [vmem:[#allocation2] sm:$0x1] %v226
      %vm228 = vsmask.f32 7938
      %vm229 = vmand %vm222, %vm228
      %v230 = vld [vmem:[#allocation2 + $0x8] sm:$0x1]
      %v231 = vsel %vm229, 0, %v230
      %232 = vst [vmem:[#allocation2 + $0x8] sm:$0x1] %v231
      %v233 = vld [vmem:[%s192] sm:$0xf]
      %v234 = vld [vmem:[%s192 + $0x4] sm:$0xf]
      %vm235 = vsmask.f32 4368
      %vm236 = vmor %vm223, %vm235
      %v238 = vshrl.u32 %v233, 16
      %v240 = vrot.slane %v238, 7
      %v241 = vshll.u32 %v233, 16
      %v243 = vor.u32 %v240, %v241
      %v244 = vrot.slane %v240, 4
      %v246 = vshrl.u32 %v234, 16
      %v248 = vrot.slane %v246, 7
      %v249 = vshll.u32 %v234, 16
      %v251 = vor.u32 %v248, %v249
      %v252 = vsel %vm236, %v244, %v251
      %v253 = vrot.slane %v248, 4
      %vm257 = vcmask 519168
      %vm258 = vmand %vm257, %vm228
      %v259 = vld [vmem:[#allocation2] sm:$0xf]
      %v260 = vsel %vm258, %v243, %v259
      %261 = vst [vmem:[#allocation2] sm:$0xf] %v260
      %vm262 = vcmask 519168
      %263 = vst.msk [vmem:[#allocation2 + $0x4] sm:$0xf] %vm262, %v252
      %v264 = vld [vmem:[#allocation2 + $0x8] sm:$0x1]
      %v265 = vsel %vm224, %v253, %v264
      %266 = vst [vmem:[#allocation2 + $0x8] sm:$0x1] %v265
      %v267 = vld [vmem:[#allocation2] sm:$0xf]
      %v268 = vld [vmem:[#allocation2 + $0x4] sm:$0xf]
      %v269 = vld [vmem:[%s1] sm:$0xff]
      %v270 = vld [vmem:[%s1 + $0x8] sm:$0xff]
      %v271 = vld [vmem:[%s1 + $0x10] sm:$0xff]
      %v272 = vld [vmem:[%s1 + $0x18] sm:$0xff]
      %v273 = vld [vmem:[%s1 + $0x20] sm:$0xff]
      %v274 = vld [vmem:[%s1 + $0x28] sm:$0xff]
      %v275 = vld [vmem:[%s1 + $0x30] sm:$0xff]
      %v276 = vld [vmem:[%s1 + $0x38] sm:$0xff]
      %v277 = vld [vmem:[%s1 + $0x40] sm:$0xff]
      %v278 = vld [vmem:[%s1 + $0x48] sm:$0xff]
      %v279 = vld [vmem:[%s1 + $0x50] sm:$0xff]
      %v280 = vld [vmem:[%s1 + $0x58] sm:$0xff]
      %v281 = vld [vmem:[%s1 + $0x60] sm:$0xff]
      %v282 = vld [vmem:[%s1 + $0x68] sm:$0xff]
      %v283 = vld [vmem:[%s1 + $0x70] sm:$0xff]
      %v284 = vld [vmem:[%s1 + $0x78] sm:$0xff]
      %v287 = vunpack.c.l.b16 %v267
      %v288 = vunpack.c.l.b16 %v268
      %v289 = vpack.c.b16 %v288, %v287
      %v306 = vunpack.c.l.b16 %v269
      %v307 = vunpack.c.h.b16 %v269
      %v308 = vunpack.c.l.b16 %v270
      %v309 = vunpack.c.h.b16 %v270
      %v310 = vunpack.c.l.b16 %v271
      %v311 = vunpack.c.h.b16 %v271
      %v312 = vunpack.c.l.b16 %v272
      %v313 = vunpack.c.h.b16 %v272
      %v314 = vunpack.c.l.b16 %v273
      %v315 = vunpack.c.h.b16 %v273
      %v316 = vunpack.c.l.b16 %v274
      %v317 = vunpack.c.h.b16 %v274
      %v318 = vunpack.c.l.b16 %v275
      %v319 = vunpack.c.h.b16 %v275
      %v320 = vunpack.c.l.b16 %v276
      %v321 = vunpack.c.h.b16 %v276
      %v322 = vunpack.c.l.b16 %v277
      %v323 = vunpack.c.h.b16 %v277
      %v324 = vunpack.c.l.b16 %v278
      %v325 = vunpack.c.h.b16 %v278
      %v326 = vunpack.c.l.b16 %v279
      %v327 = vunpack.c.h.b16 %v279
      %v328 = vunpack.c.l.b16 %v280
      %v329 = vunpack.c.h.b16 %v280
      %v330 = vunpack.c.l.b16 %v281
      %v331 = vunpack.c.h.b16 %v281
      %v332 = vunpack.c.l.b16 %v282
      %v333 = vunpack.c.h.b16 %v282
      %v334 = vunpack.c.l.b16 %v283
      %v335 = vunpack.c.h.b16 %v283
      %v336 = vunpack.c.l.b16 %v284
      %v337 = vunpack.c.h.b16 %v284
      %v338 = vpack.c.b16 %v310, %v306
      %v339 = vpack.c.b16 %v311, %v307
      %v340 = vpack.c.b16 %v312, %v308
      %v341 = vpack.c.b16 %v313, %v309
      %v342 = vpack.c.b16 %v318, %v314
      %v343 = vpack.c.b16 %v319, %v315
      %v344 = vpack.c.b16 %v320, %v316
      %v345 = vpack.c.b16 %v321, %v317
      %v346 = vpack.c.b16 %v326, %v322
      %v347 = vpack.c.b16 %v327, %v323
      %v348 = vpack.c.b16 %v328, %v324
      %v349 = vpack.c.b16 %v329, %v325
      %v350 = vpack.c.b16 %v334, %v330
      %v351 = vpack.c.b16 %v335, %v331
      %v352 = vpack.c.b16 %v336, %v332
      %v353 = vpack.c.b16 %v337, %v333
      %vm370 = vcmask 523264
      %v372 = vsel %vm370, %v289, 0
      %374 = vmatprep.subr.bf16.mxu0 0
      %375 = vmatpush1.bf16.msra.mxu0 0
      %376 = vmatprep.subr.bf16.mxu0 0
      %377 = vmatpush1.bf16.msra.mxu0 0
      %378 = vmatprep.subr.bf16.mxu0 0
      %379 = vmatpush1.bf16.msra.mxu0 0
      %380 = vmatprep.subr.bf16.mxu0 0
      %381 = vmatpush1.bf16.msra.mxu0 0
      %382 = vmatprep.subr.bf16.mxu0 %v351
      %383 = vmatpush1.bf16.msra.mxu0 %v350
      %384 = vmatprep.subr.bf16.mxu0 %v347
      %385 = vmatpush1.bf16.msra.mxu0 %v346
      %386 = vmatprep.subr.bf16.mxu0 %v343
      %387 = vmatpush1.bf16.msra.mxu0 %v342
      %388 = vmatprep.subr.bf16.mxu0 %v339
      %389 = vmatpush1.bf16.msra.mxu0 %v338
      %390 = vmatprep.subr.bf16.mxu0 0
      %391 = vmatpush2.bf16.msra.mxu0 0
      %392 = vmatprep.subr.bf16.mxu0 0
      %393 = vmatpush2.bf16.msra.mxu0 0
      %394 = vmatprep.subr.bf16.mxu0 0
      %395 = vmatpush2.bf16.msra.mxu0 0
      %396 = vmatprep.subr.bf16.mxu0 0
      %397 = vmatpush2.bf16.msra.mxu0 0
      %398 = vmatprep.subr.bf16.mxu0 0
      %399 = vmatpush2.bf16.msra.mxu0 0
      %400 = vmatprep.subr.bf16.mxu0 0
      %401 = vmatpush2.bf16.msra.mxu0 0
      %402 = vmatprep.subr.bf16.mxu0 0
      %403 = vmatpush2.bf16.msra.mxu0 0
      %404 = vmatprep.subr.bf16.mxu0 0
      %405 = vmatpush2.bf16.msra.mxu0 0
      %406 = vmatprep.mubr.bf16.mxu0 0
      %407 = vmatmul.mubr.bf16.gmra.mxu0 %v372
      %v408 = vpop.f32.mrf.mxu0
      %v409 = vadd.f32 0.0, %v408
      %v410 = vpop.f32.mrf.mxu0
      %v411 = vadd.f32 0.0, %v410
      %v412 = vpop.f32.mrf.mxu0
      %v413 = vadd.f32 0.0, %v412
      %v414 = vpop.f32.mrf.mxu0
      %v415 = vadd.f32 0.0, %v414
      %416 = vdwg.mxu0
      %417 = vmatprep.subr.bf16.mxu0 0
      %418 = vmatpush1.bf16.msra.mxu0 0
      %419 = vmatprep.subr.bf16.mxu0 0
      %420 = vmatpush1.bf16.msra.mxu0 0
      %421 = vmatprep.subr.bf16.mxu0 0
      %422 = vmatpush1.bf16.msra.mxu0 0
      %423 = vmatprep.subr.bf16.mxu0 0
      %424 = vmatpush1.bf16.msra.mxu0 0
      %425 = vmatprep.subr.bf16.mxu0 %v353
      %426 = vmatpush1.bf16.msra.mxu0 %v352
      %427 = vmatprep.subr.bf16.mxu0 %v349
      %428 = vmatpush1.bf16.msra.mxu0 %v348
      %429 = vmatprep.subr.bf16.mxu0 %v345
      %430 = vmatpush1.bf16.msra.mxu0 %v344
      %431 = vmatprep.subr.bf16.mxu0 %v341
      %432 = vmatpush1.bf16.msra.mxu0 %v340
      %433 = vmatprep.subr.bf16.mxu0 0
      %434 = vmatpush2.bf16.msra.mxu0 0
      %435 = vmatprep.subr.bf16.mxu0 0
      %436 = vmatpush2.bf16.msra.mxu0 0
      %437 = vmatprep.subr.bf16.mxu0 0
      %438 = vmatpush2.bf16.msra.mxu0 0
      %439 = vmatprep.subr.bf16.mxu0 0
      %440 = vmatpush2.bf16.msra.mxu0 0
      %441 = vmatprep.subr.bf16.mxu0 0
      %442 = vmatpush2.bf16.msra.mxu0 0
      %443 = vmatprep.subr.bf16.mxu0 0
      %444 = vmatpush2.bf16.msra.mxu0 0
      %445 = vmatprep.subr.bf16.mxu0 0
      %446 = vmatpush2.bf16.msra.mxu0 0
      %447 = vmatprep.subr.bf16.mxu0 0
      %448 = vmatpush2.bf16.msra.mxu0 0
      %449 = vmatprep.mubr.bf16.mxu0 0
      %450 = vmatmul.mubr.bf16.gmra.mxu0 %v372
      %v451 = vpop.f32.mrf.mxu0
      %v452 = vadd.f32 0.0, %v451
      %v453 = vpop.f32.mrf.mxu0
      %v454 = vadd.f32 0.0, %v453
      %v455 = vpop.f32.mrf.mxu0
      %v456 = vadd.f32 0.0, %v455
      %v457 = vpop.f32.mrf.mxu0
      %v458 = vadd.f32 0.0, %v457
      %459 = vdwg.mxu0
      %v460 = vadd.f32 %v204, %v409
      %v461 = vadd.f32 %v208, %v411
      %v462 = vadd.f32 %v212, %v452
      %v463 = vadd.f32 %v216, %v454
      %v464 = vadd.f32 %v204, %v413
      %v465 = vadd.f32 %v208, %v415
      %v466 = vadd.f32 %v212, %v456
      %v467 = vadd.f32 %v216, %v458
      %v468 = vld [vmem:[#allocation2] sm:$0xf]
      %v469 = vld [vmem:[#allocation2 + $0x4] sm:$0xf]
      %v470 = vld [vmem:[#allocation2 + $0x8] sm:$0x1]
      %s471 = scalar_lea.vmem %s1, 128
      %v472 = vld [vmem:[%s471] sm:$0xff]
      %v473 = vld [vmem:[%s471 + $0x8] sm:$0xff]
      %v474 = vld [vmem:[%s471 + $0x10] sm:$0xff]
      %v475 = vld [vmem:[%s471 + $0x18] sm:$0xff]
      %v476 = vld [vmem:[%s471 + $0x20] sm:$0xff]
      %v477 = vld [vmem:[%s471 + $0x28] sm:$0xff]
      %v478 = vld [vmem:[%s471 + $0x30] sm:$0xff]
      %v479 = vld [vmem:[%s471 + $0x38] sm:$0xff]
      %v480 = vld [vmem:[%s471 + $0x40] sm:$0xff]
      %v481 = vld [vmem:[%s471 + $0x48] sm:$0xff]
      %v482 = vld [vmem:[%s471 + $0x50] sm:$0xff]
      %v483 = vld [vmem:[%s471 + $0x58] sm:$0xff]
      %v484 = vld [vmem:[%s471 + $0x60] sm:$0xff]
      %v485 = vld [vmem:[%s471 + $0x68] sm:$0xff]
      %v486 = vld [vmem:[%s471 + $0x70] sm:$0xff]
      %v487 = vld [vmem:[%s471 + $0x78] sm:$0xff]
      %v491 = vunpack.c.l.b16 %v468
      %v492 = vunpack.c.l.b16 %v469
      %v493 = vunpack.c.l.b16 %v470
      %v494 = vpack.c.b16 %v492, %v491
      %v495 = vpack.c.b16 %v493, %v493
      %vm496 = vsmask.f32 7424
      %v498 = vshrl.u32 %v494, 16
      %v500 = vshll.u32 %v494, 16
      %v502 = vrot.slane %v500, 1
      %v503 = vor.u32 %v498, %v502
      %v505 = vshll.u32 %v495, 16
      %v507 = vrot.slane %v505, 1
      %v508 = vsel %vm496, %v503, %v507
      %v525 = vunpack.c.l.b16 %v472
      %v526 = vunpack.c.h.b16 %v472
      %v527 = vunpack.c.l.b16 %v473
      %v528 = vunpack.c.h.b16 %v473
      %v529 = vunpack.c.l.b16 %v474
      %v530 = vunpack.c.h.b16 %v474
      %v531 = vunpack.c.l.b16 %v475
      %v532 = vunpack.c.h.b16 %v475
      %v533 = vunpack.c.l.b16 %v476
      %v534 = vunpack.c.h.b16 %v476
      %v535 = vunpack.c.l.b16 %v477
      %v536 = vunpack.c.h.b16 %v477
      %v537 = vunpack.c.l.b16 %v478
      %v538 = vunpack.c.h.b16 %v478
      %v539 = vunpack.c.l.b16 %v479
      %v540 = vunpack.c.h.b16 %v479
      %v541 = vunpack.c.l.b16 %v480
      %v542 = vunpack.c.h.b16 %v480
      %v543 = vunpack.c.l.b16 %v481
      %v544 = vunpack.c.h.b16 %v481
      %v545 = vunpack.c.l.b16 %v482
      %v546 = vunpack.c.h.b16 %v482
      %v547 = vunpack.c.l.b16 %v483
      %v548 = vunpack.c.h.b16 %v483
      %v549 = vunpack.c.l.b16 %v484
      %v550 = vunpack.c.h.b16 %v484
      %v551 = vunpack.c.l.b16 %v485
      %v552 = vunpack.c.h.b16 %v485
      %v553 = vunpack.c.l.b16 %v486
      %v554 = vunpack.c.h.b16 %v486
      %v555 = vunpack.c.l.b16 %v487
      %v556 = vunpack.c.h.b16 %v487
      %v557 = vpack.c.b16 %v529, %v525
      %v558 = vpack.c.b16 %v530, %v526
      %v559 = vpack.c.b16 %v531, %v527
      %v560 = vpack.c.b16 %v532, %v528
      %v561 = vpack.c.b16 %v537, %v533
      %v562 = vpack.c.b16 %v538, %v534
      %v563 = vpack.c.b16 %v539, %v535
      %v564 = vpack.c.b16 %v540, %v536
      %v565 = vpack.c.b16 %v545, %v541
      %v566 = vpack.c.b16 %v546, %v542
      %v567 = vpack.c.b16 %v547, %v543
      %v568 = vpack.c.b16 %v548, %v544
      %v569 = vpack.c.b16 %v553, %v549
      %v570 = vpack.c.b16 %v554, %v550
      %v571 = vpack.c.b16 %v555, %v551
      %v572 = vpack.c.b16 %v556, %v552
      %v590 = vsel %vm370, %v508, 0
      %592 = vmatprep.subr.bf16.mxu0 0
      %593 = vmatpush1.bf16.msra.mxu0 0
      %594 = vmatprep.subr.bf16.mxu0 0
      %595 = vmatpush1.bf16.msra.mxu0 0
      %596 = vmatprep.subr.bf16.mxu0 0
      %597 = vmatpush1.bf16.msra.mxu0 0
      %598 = vmatprep.subr.bf16.mxu0 0
      %599 = vmatpush1.bf16.msra.mxu0 0
      %600 = vmatprep.subr.bf16.mxu0 %v570
      %601 = vmatpush1.bf16.msra.mxu0 %v569
      %602 = vmatprep.subr.bf16.mxu0 %v566
      %603 = vmatpush1.bf16.msra.mxu0 %v565
      %604 = vmatprep.subr.bf16.mxu0 %v562
      %605 = vmatpush1.bf16.msra.mxu0 %v561
      %606 = vmatprep.subr.bf16.mxu0 %v558
      %607 = vmatpush1.bf16.msra.mxu0 %v557
      %608 = vmatprep.subr.bf16.mxu0 0
      %609 = vmatpush2.bf16.msra.mxu0 0
      %610 = vmatprep.subr.bf16.mxu0 0
      %611 = vmatpush2.bf16.msra.mxu0 0
      %612 = vmatprep.subr.bf16.mxu0 0
      %613 = vmatpush2.bf16.msra.mxu0 0
      %614 = vmatprep.subr.bf16.mxu0 0
      %615 = vmatpush2.bf16.msra.mxu0 0
      %616 = vmatprep.subr.bf16.mxu0 0
      %617 = vmatpush2.bf16.msra.mxu0 0
      %618 = vmatprep.subr.bf16.mxu0 0
      %619 = vmatpush2.bf16.msra.mxu0 0
      %620 = vmatprep.subr.bf16.mxu0 0
      %621 = vmatpush2.bf16.msra.mxu0 0
      %622 = vmatprep.subr.bf16.mxu0 0
      %623 = vmatpush2.bf16.msra.mxu0 0
      %624 = vmatprep.mubr.bf16.mxu0 0
      %625 = vmatmul.mubr.bf16.gmra.mxu0 %v590
      %v626 = vpop.f32.mrf.mxu0
      %v627 = vadd.f32 0.0, %v626
      %v628 = vpop.f32.mrf.mxu0
      %v629 = vadd.f32 0.0, %v628
      %v630 = vpop.f32.mrf.mxu0
      %v631 = vadd.f32 0.0, %v630
      %v632 = vpop.f32.mrf.mxu0
      %v633 = vadd.f32 0.0, %v632
      %634 = vdwg.mxu0
      %635 = vmatprep.subr.bf16.mxu0 0
      %636 = vmatpush1.bf16.msra.mxu0 0
      %637 = vmatprep.subr.bf16.mxu0 0
      %638 = vmatpush1.bf16.msra.mxu0 0
      %639 = vmatprep.subr.bf16.mxu0 0
      %640 = vmatpush1.bf16.msra.mxu0 0
      %641 = vmatprep.subr.bf16.mxu0 0
      %642 = vmatpush1.bf16.msra.mxu0 0
      %643 = vmatprep.subr.bf16.mxu0 %v572
      %644 = vmatpush1.bf16.msra.mxu0 %v571
      %645 = vmatprep.subr.bf16.mxu0 %v568
      %646 = vmatpush1.bf16.msra.mxu0 %v567
      %647 = vmatprep.subr.bf16.mxu0 %v564
      %648 = vmatpush1.bf16.msra.mxu0 %v563
      %649 = vmatprep.subr.bf16.mxu0 %v560
      %650 = vmatpush1.bf16.msra.mxu0 %v559
      %651 = vmatprep.subr.bf16.mxu0 0
      %652 = vmatpush2.bf16.msra.mxu0 0
      %653 = vmatprep.subr.bf16.mxu0 0
      %654 = vmatpush2.bf16.msra.mxu0 0
      %655 = vmatprep.subr.bf16.mxu0 0
      %656 = vmatpush2.bf16.msra.mxu0 0
      %657 = vmatprep.subr.bf16.mxu0 0
      %658 = vmatpush2.bf16.msra.mxu0 0
      %659 = vmatprep.subr.bf16.mxu0 0
      %660 = vmatpush2.bf16.msra.mxu0 0
      %661 = vmatprep.subr.bf16.mxu0 0
      %662 = vmatpush2.bf16.msra.mxu0 0
      %663 = vmatprep.subr.bf16.mxu0 0
      %664 = vmatpush2.bf16.msra.mxu0 0
      %665 = vmatprep.subr.bf16.mxu0 0
      %666 = vmatpush2.bf16.msra.mxu0 0
      %667 = vmatprep.mubr.bf16.mxu0 0
      %668 = vmatmul.mubr.bf16.gmra.mxu0 %v590
      %v669 = vpop.f32.mrf.mxu0
      %v670 = vadd.f32 0.0, %v669
      %v671 = vpop.f32.mrf.mxu0
      %v672 = vadd.f32 0.0, %v671
      %v673 = vpop.f32.mrf.mxu0
      %v674 = vadd.f32 0.0, %v673
      %v675 = vpop.f32.mrf.mxu0
      %v676 = vadd.f32 0.0, %v675
      %677 = vdwg.mxu0
      %v678 = vadd.f32 %v460, %v627
      %v679 = vadd.f32 %v461, %v629
      %v680 = vadd.f32 %v462, %v670
      %v681 = vadd.f32 %v463, %v672
      %v682 = vadd.f32 %v464, %v631
      %v683 = vadd.f32 %v465, %v633
      %v684 = vadd.f32 %v466, %v674
      %v685 = vadd.f32 %v467, %v676
      %v686 = vld [vmem:[#allocation2] sm:$0xe]
      %s687 = scalar_lea.vmem %s1, 256
      %v688 = vld [vmem:[%s687] sm:$0xff]
      %v689 = vld [vmem:[%s687 + $0x8] sm:$0xff]
      %v690 = vld [vmem:[%s687 + $0x10] sm:$0xff]
      %v691 = vld [vmem:[%s687 + $0x18] sm:$0xff]
      %v692 = vld [vmem:[%s687 + $0x20] sm:$0xff]
      %v693 = vld [vmem:[%s687 + $0x28] sm:$0xff]
      %v694 = vld [vmem:[%s687 + $0x30] sm:$0xff]
      %v695 = vld [vmem:[%s687 + $0x38] sm:$0xff]
      %v696 = vld [vmem:[%s687 + $0x40] sm:$0xff]
      %v697 = vld [vmem:[%s687 + $0x48] sm:$0xff]
      %v698 = vld [vmem:[%s687 + $0x50] sm:$0xff]
      %v699 = vld [vmem:[%s687 + $0x58] sm:$0xff]
      %v700 = vld [vmem:[%s687 + $0x60] sm:$0xff]
      %v701 = vld [vmem:[%s687 + $0x68] sm:$0xff]
      %v702 = vld [vmem:[%s687 + $0x70] sm:$0xff]
      %v703 = vld [vmem:[%s687 + $0x78] sm:$0xff]
      %v705 = vunpack.c.l.b16 %v686
      %v706 = vpack.c.b16 %v492, %v705
      %vm707 = vcmask 1046528
      %v708 = vrot.slane %v706, 1
      %v709 = vrot.slane %v495, 1
      %v710 = vsel %vm707, %v708, %v709
      %v727 = vunpack.c.l.b16 %v688
      %v728 = vunpack.c.h.b16 %v688
      %v729 = vunpack.c.l.b16 %v689
      %v730 = vunpack.c.h.b16 %v689
      %v731 = vunpack.c.l.b16 %v690
      %v732 = vunpack.c.h.b16 %v690
      %v733 = vunpack.c.l.b16 %v691
      %v734 = vunpack.c.h.b16 %v691
      %v735 = vunpack.c.l.b16 %v692
      %v736 = vunpack.c.h.b16 %v692
      %v737 = vunpack.c.l.b16 %v693
      %v738 = vunpack.c.h.b16 %v693
      %v739 = vunpack.c.l.b16 %v694
      %v740 = vunpack.c.h.b16 %v694
      %v741 = vunpack.c.l.b16 %v695
      %v742 = vunpack.c.h.b16 %v695
      %v743 = vunpack.c.l.b16 %v696
      %v744 = vunpack.c.h.b16 %v696
      %v745 = vunpack.c.l.b16 %v697
      %v746 = vunpack.c.h.b16 %v697
      %v747 = vunpack.c.l.b16 %v698
      %v748 = vunpack.c.h.b16 %v698
      %v749 = vunpack.c.l.b16 %v699
      %v750 = vunpack.c.h.b16 %v699
      %v751 = vunpack.c.l.b16 %v700
      %v752 = vunpack.c.h.b16 %v700
      %v753 = vunpack.c.l.b16 %v701
      %v754 = vunpack.c.h.b16 %v701
      %v755 = vunpack.c.l.b16 %v702
      %v756 = vunpack.c.h.b16 %v702
      %v757 = vunpack.c.l.b16 %v703
      %v758 = vunpack.c.h.b16 %v703
      %v759 = vpack.c.b16 %v731, %v727
      %v760 = vpack.c.b16 %v732, %v728
      %v761 = vpack.c.b16 %v733, %v729
      %v762 = vpack.c.b16 %v734, %v730
      %v763 = vpack.c.b16 %v739, %v735
      %v764 = vpack.c.b16 %v740, %v736
      %v765 = vpack.c.b16 %v741, %v737
      %v766 = vpack.c.b16 %v742, %v738
      %v767 = vpack.c.b16 %v747, %v743
      %v768 = vpack.c.b16 %v748, %v744
      %v769 = vpack.c.b16 %v749, %v745
      %v770 = vpack.c.b16 %v750, %v746
      %v771 = vpack.c.b16 %v755, %v751
      %v772 = vpack.c.b16 %v756, %v752
      %v773 = vpack.c.b16 %v757, %v753
      %v774 = vpack.c.b16 %v758, %v754
      %v792 = vsel %vm370, %v710, 0
      %794 = vmatprep.subr.bf16.mxu0 0
      %795 = vmatpush1.bf16.msra.mxu0 0
      %796 = vmatprep.subr.bf16.mxu0 0
      %797 = vmatpush1.bf16.msra.mxu0 0
      %798 = vmatprep.subr.bf16.mxu0 0
      %799 = vmatpush1.bf16.msra.mxu0 0
      %800 = vmatprep.subr.bf16.mxu0 0
      %801 = vmatpush1.bf16.msra.mxu0 0
      %802 = vmatprep.subr.bf16.mxu0 %v772
      %803 = vmatpush1.bf16.msra.mxu0 %v771
      %804 = vmatprep.subr.bf16.mxu0 %v768
      %805 = vmatpush1.bf16.msra.mxu0 %v767
      %806 = vmatprep.subr.bf16.mxu0 %v764
      %807 = vmatpush1.bf16.msra.mxu0 %v763
      %808 = vmatprep.subr.bf16.mxu0 %v760
      %809 = vmatpush1.bf16.msra.mxu0 %v759
      %810 = vmatprep.subr.bf16.mxu0 0
      %811 = vmatpush2.bf16.msra.mxu0 0
      %812 = vmatprep.subr.bf16.mxu0 0
      %813 = vmatpush2.bf16.msra.mxu0 0
      %814 = vmatprep.subr.bf16.mxu0 0
      %815 = vmatpush2.bf16.msra.mxu0 0
      %816 = vmatprep.subr.bf16.mxu0 0
      %817 = vmatpush2.bf16.msra.mxu0 0
      %818 = vmatprep.subr.bf16.mxu0 0
      %819 = vmatpush2.bf16.msra.mxu0 0
      %820 = vmatprep.subr.bf16.mxu0 0
      %821 = vmatpush2.bf16.msra.mxu0 0
      %822 = vmatprep.subr.bf16.mxu0 0
      %823 = vmatpush2.bf16.msra.mxu0 0
      %824 = vmatprep.subr.bf16.mxu0 0
      %825 = vmatpush2.bf16.msra.mxu0 0
      %826 = vmatprep.mubr.bf16.mxu0 0
      %827 = vmatmul.mubr.bf16.gmra.mxu0 %v792
      %v828 = vpop.f32.mrf.mxu0
      %v829 = vadd.f32 0.0, %v828
      %v830 = vpop.f32.mrf.mxu0
      %v831 = vadd.f32 0.0, %v830
      %v832 = vpop.f32.mrf.mxu0
      %v833 = vadd.f32 0.0, %v832
      %v834 = vpop.f32.mrf.mxu0
      %v835 = vadd.f32 0.0, %v834
      %836 = vdwg.mxu0
      %837 = vmatprep.subr.bf16.mxu0 0
      %838 = vmatpush1.bf16.msra.mxu0 0
      %839 = vmatprep.subr.bf16.mxu0 0
      %840 = vmatpush1.bf16.msra.mxu0 0
      %841 = vmatprep.subr.bf16.mxu0 0
      %842 = vmatpush1.bf16.msra.mxu0 0
      %843 = vmatprep.subr.bf16.mxu0 0
      %844 = vmatpush1.bf16.msra.mxu0 0
      %845 = vmatprep.subr.bf16.mxu0 %v774
      %846 = vmatpush1.bf16.msra.mxu0 %v773
      %847 = vmatprep.subr.bf16.mxu0 %v770
      %848 = vmatpush1.bf16.msra.mxu0 %v769
      %849 = vmatprep.subr.bf16.mxu0 %v766
      %850 = vmatpush1.bf16.msra.mxu0 %v765
      %851 = vmatprep.subr.bf16.mxu0 %v762
      %852 = vmatpush1.bf16.msra.mxu0 %v761
      %853 = vmatprep.subr.bf16.mxu0 0
      %854 = vmatpush2.bf16.msra.mxu0 0
      %855 = vmatprep.subr.bf16.mxu0 0
      %856 = vmatpush2.bf16.msra.mxu0 0
      %857 = vmatprep.subr.bf16.mxu0 0
      %858 = vmatpush2.bf16.msra.mxu0 0
      %859 = vmatprep.subr.bf16.mxu0 0
      %860 = vmatpush2.bf16.msra.mxu0 0
      %861 = vmatprep.subr.bf16.mxu0 0
      %862 = vmatpush2.bf16.msra.mxu0 0
      %863 = vmatprep.subr.bf16.mxu0 0
      %864 = vmatpush2.bf16.msra.mxu0 0
      %865 = vmatprep.subr.bf16.mxu0 0
      %866 = vmatpush2.bf16.msra.mxu0 0
      %867 = vmatprep.subr.bf16.mxu0 0
      %868 = vmatpush2.bf16.msra.mxu0 0
      %869 = vmatprep.mubr.bf16.mxu0 0
      %870 = vmatmul.mubr.bf16.gmra.mxu0 %v792
      %v871 = vpop.f32.mrf.mxu0
      %v872 = vadd.f32 0.0, %v871
      %v873 = vpop.f32.mrf.mxu0
      %v874 = vadd.f32 0.0, %v873
      %v875 = vpop.f32.mrf.mxu0
      %v876 = vadd.f32 0.0, %v875
      %v877 = vpop.f32.mrf.mxu0
      %v878 = vadd.f32 0.0, %v877
      %879 = vdwg.mxu0
      %v880 = vadd.f32 %v678, %v829
      %v881 = vadd.f32 %v679, %v831
      %v882 = vadd.f32 %v680, %v872
      %v883 = vadd.f32 %v681, %v874
      %v884 = vadd.f32 %v682, %v833
      %v885 = vadd.f32 %v683, %v835
      %v886 = vadd.f32 %v684, %v876
      %v887 = vadd.f32 %v685, %v878
      %vm888 = vcmp.ge.f32.partialorder %v880, 0.0
      %vm889 = vcmp.ge.f32.partialorder %v881, 0.0
      %vm890 = vcmp.ge.f32.partialorder %v882, 0.0
      %vm891 = vcmp.ge.f32.partialorder %v883, 0.0
      %vm892 = vcmp.ge.f32.partialorder %v884, 0.0
      %vm893 = vcmp.ge.f32.partialorder %v885, 0.0
      %vm894 = vcmp.ge.f32.partialorder %v886, 0.0
      %vm895 = vcmp.ge.f32.partialorder %v887, 0.0
      %v897 = vlaneseq
      %v898 = vshrl.u32 %v897, 7
      %v899 = vsub.s32 0, %v898
      %v900 = vrot.slane %v221, %v899
      %v901 = vlaneseq
      %v902 = vshrl.u32 %v901, 7
      %v903 = vsub.s32 1, %v902
      %v904 = vrot.slane %v221, %v903
      %v905 = vlaneseq
      %v906 = vshrl.u32 %v905, 7
      %v907 = vsub.s32 2, %v906
      %v908 = vrot.slane %v221, %v907
      %v909 = vlaneseq
      %v910 = vshrl.u32 %v909, 7
      %v911 = vsub.s32 3, %v910
      %v912 = vrot.slane %v221, %v911
      %v917 = vmul.f32 %v900, %v880
      %v918 = vmul.f32 %v904, %v881
      %v919 = vmul.f32 %v908, %v882
      %v920 = vmul.f32 %v912, %v883
      %v921 = vmul.f32 %v900, %v884
      %v922 = vmul.f32 %v904, %v885
      %v923 = vmul.f32 %v908, %v886
      %v924 = vmul.f32 %v912, %v887
      %v925 = vsel %vm888, %v880, %v917
      %v926 = vsel %vm889, %v881, %v918
      %v927 = vsel %vm890, %v882, %v919
      %v928 = vsel %vm891, %v883, %v920
      %v929 = vsel %vm892, %v884, %v921
      %v930 = vsel %vm893, %v885, %v922
      %v931 = vsel %vm894, %v886, %v923
      %v932 = vsel %vm895, %v887, %v924
      %933 = vst [vmem:[%s197] sm:$0xff] %v925
      %934 = vst [vmem:[%s197 + $0x8] sm:$0xff] %v926
      %935 = vst [vmem:[%s197 + $0x10] sm:$0xff] %v927
      %936 = vst [vmem:[%s197 + $0x18] sm:$0xff] %v928
      %937 = vst [vmem:[%s197 + $0x20] sm:$0xff] %v929
      %938 = vst [vmem:[%s197 + $0x28] sm:$0xff] %v930
      %939 = vst [vmem:[%s197 + $0x30] sm:$0xff] %v931
      %940 = vst [vmem:[%s197 + $0x38] sm:$0xff] %v932
      %p941 = scmp.lt.s32.totalorder %s15, 1
      %s942 = scalar_select %p941, %s15, 1
      %s943 = smul.addr %s942, 8
      %s944 = smul.addr %s943, 8
      %s945 = scalar_lea.vmem %s4, %s944
      // Predicated region
      $region37: #{forward.1} parent=35 // pred_check
        %p946 = pneg %p122
      $region38: #{forward.1} parent=35 // pred_check_branch
        %948 = sbr.rel (%p946) target = $region40
      $region39: #{forward.1} parent=35 // pred_region
        _
      $region40: #{forward.1} parent=35 // pred_fallthru
        _
    $region36: #{forward.1} parent=5 // pred_fallthru
      _
    %p949 = scmp.le.s32.totalorder 2, %s10
    // Predicated region
    $region41: #{forward.1} parent=5 // pred_check
      %p950 = pneg %p949
    $region42: #{forward.1} parent=5 // pred_check_branch
      %952 = sbr.rel (%p950) target = $region44
    $region43: #{forward.1} parent=5 // pred_region
      %s953 = ssub.s32 %s10, 2
      // Predicated region
      $region45: #{forward.1} parent=43 // pred_check
        %p954 = pneg %p128
      $region46: #{forward.1} parent=43 // pred_check_branch
        %956 = sbr.rel (%p954) target = $region48
      $region47: #{forward.1} parent=43 // pred_region
        %p957 = scmp.lt.s32.totalorder %s16, 1
        %s958 = scalar_select %p957, %s16, 1
        %s959 = smul.addr %s958, 8
        %s960 = smul.addr %s959, 8
        %s961 = scalar_lea.vmem %s4, %s960
      $region48: #{forward.1} parent=43 // pred_fallthru
        _
    $region44: #{forward.1} parent=5 // pred_fallthru
      _
  $region6: #{forward.1} parent=0 // loop_footer
    %s14 = sadd.s32 1, %s10
  $region7: #{forward.1} parent=0 // loop_footer_branch
    %9 = sbr.rel target = $region3
  $region8: #{forward.1} parent=0 // loop_exit
    _

</llo_original>
